<compile_context>
chip_gen: v6e
topology: v6e:2x2x1
jax: 0.10.0
libtpu: 0.0.40
codegen_flags: <defaults>
</compile_context>

<pallas_src>
import functools

import jax
import jax.numpy as jnp
from jax import lax
from jax.experimental import pallas as pl
from jax.experimental.pallas import tpu as pltpu

# --- GeoTransformer coarse-loss config (deterministic, in-script) -----------
POSITIVE_MARGIN = 0.1
NEGATIVE_MARGIN = 1.4
POSITIVE_OPTIMAL = 0.1
NEGATIVE_OPTIMAL = 1.4
LOG_SCALE = 24.0
POSITIVE_OVERLAP = 0.1

_NEG_INF = -1e30  # finite "minus infinity": padded entries vanish from logsumexp


def _round_up(x, m):
    return ((x + m - 1) // m) * m


def _coarse_matching_loss_kernel(n_valid, m_valid, k_corr,
                                 ref_idx_ref, src_idx_ref, ovl_val_ref,
                                 ref_ref, src_ref, loss_ref):
    ref = ref_ref[...]                           # (N_pad, C_pad) f32
    src = src_ref[...]                           # (M_pad, C_pad) f32
    n_pad = ref.shape[0]
    m_pad = src.shape[0]

    # pairwise_distance(ref, src, normalized=True) = sqrt(clamp(2 - 2 ref@src^T, 0))
    # Contract the feature axes directly — no transposed src operand.
    xy = lax.dot_general(ref, src,
                         dimension_numbers=(((1,), (1,)), ((), ())),
                         preferred_element_type=jnp.float32)    # (N_pad, M_pad)
    feat_dists = jnp.sqrt(jnp.maximum(2.0 - 2.0 * xy, 0.0))

    # Build the dense overlaps matrix in-kernel from SMEM-resident sparse GT
    # correspondences (torch: overlaps[gt_ref_idx, gt_src_idx] = gt_overlaps).
    row_ids = lax.broadcasted_iota(jnp.int32, (n_pad, m_pad), 0)
    col_ids = lax.broadcasted_iota(jnp.int32, (n_pad, m_pad), 1)

    ovl = jnp.zeros((n_pad, m_pad), jnp.float32)
    # TODO(synk): for large K, replace this unrolled loop with a lax.fori_loop
    # over the SMEM index arrays (dynamic scalar reads) to bound code size.
    for kk in range(k_corr):
        hit = jnp.logical_and(row_ids == ref_idx_ref[kk],
                              col_ids == src_idx_ref[kk])
        ovl = jnp.where(hit, ovl_val_ref[kk], ovl)   # last write wins (== torch)

    # Validity masks for the zero-padded rows/columns.
    valid = jnp.logical_and(row_ids < n_valid, col_ids < m_valid)

    pos_masks = jnp.logical_and(ovl > POSITIVE_OVERLAP, valid)
    neg_masks = jnp.logical_and(ovl == 0.0, valid)
    posf = pos_masks.astype(jnp.float32)
    negf = neg_masks.astype(jnp.float32)
    pos_scales = jnp.sqrt(ovl * posf)

    # Circle-loss weights (detached in torch; forward value identical).
    pos_weights = jnp.maximum(
        feat_dists - 1e5 * (1.0 - posf) - POSITIVE_OPTIMAL, 0.0) * pos_scales
    neg_weights = jnp.maximum(
        NEGATIVE_OPTIMAL - (feat_dists + 1e5 * (1.0 - negf)), 0.0)

    pos_logits = LOG_SCALE * (feat_dists - POSITIVE_MARGIN) * pos_weights
    neg_logits = LOG_SCALE * (NEGATIVE_MARGIN - feat_dists) * neg_weights

    # Valid non-pos / non-neg entries keep their exact-zero logits (as in the
    # reference logsumexp); padded entries are pushed to -inf so they vanish.
    pos_logits = jnp.where(valid, pos_logits, _NEG_INF)
    neg_logits = jnp.where(valid, neg_logits, _NEG_INF)

    def logsumexp(x, axis):
        m = jnp.max(x, axis=axis, keepdims=True)
        return m + jnp.log(jnp.sum(jnp.exp(x - m), axis=axis, keepdims=True))

    loss_pos_row = logsumexp(pos_logits, axis=1)    # (N_pad, 1)
    loss_neg_row = logsumexp(neg_logits, axis=1)    # (N_pad, 1)
    loss_pos_col = logsumexp(pos_logits, axis=0)    # (1, M_pad)
    loss_neg_col = logsumexp(neg_logits, axis=0)    # (1, M_pad)

    def softplus(x):
        return jnp.maximum(x, 0.0) + jnp.log1p(jnp.exp(-jnp.abs(x)))

    loss_row = softplus(loss_pos_row + loss_neg_row) / LOG_SCALE    # (N_pad, 1)
    loss_col = softplus(loss_pos_col + loss_neg_col) / LOG_SCALE    # (1, M_pad)

    # Anchors that have both positive and negative pairs (padded rows/cols: 0).
    row_masks = jnp.logical_and(
        jnp.sum(posf, axis=1, keepdims=True) > 0.0,
        jnp.sum(negf, axis=1, keepdims=True) > 0.0).astype(jnp.float32)
    col_masks = jnp.logical_and(
        jnp.sum(posf, axis=0, keepdims=True) > 0.0,
        jnp.sum(negf, axis=0, keepdims=True) > 0.0).astype(jnp.float32)

    row_num = jnp.sum(loss_row * row_masks, axis=0, keepdims=True)  # (1, 1)
    row_den = jnp.sum(row_masks, axis=0, keepdims=True)             # (1, 1)
    col_num = jnp.sum(loss_col * col_masks, axis=1, keepdims=True)  # (1, 1)
    col_den = jnp.sum(col_masks, axis=1, keepdims=True)             # (1, 1)

    # NOTE: parity with torch `loss[masks].mean()` -> NaN when a mask is empty.
    loss_ref[...] = 0.5 * (row_num / row_den + col_num / col_den)


@jax.jit
def coarse_matching_loss(ref_feats, src_feats, gt_node_corr_indices,
                         gt_node_corr_overlaps):
    """JAX wrapper reproducing CoarseMatchingLoss.forward (forward value only).

    TODO(synk): forward-only; pos/neg weights are detached in torch, so a
    jax.grad of this kernel would need stop_gradient / a custom VJP.
    """
    n, c = ref_feats.shape
    m, _ = src_feats.shape
    k = gt_node_corr_overlaps.shape[0]

    # Lane/sublane-dense padding: N -> x8 (sublanes), M, C -> x128 (lanes).
    n_pad = _round_up(max(n, 8), 8)
    m_pad = _round_up(max(m, 128), 128)
    c_pad = _round_up(max(c, 128), 128)

    ref_p = jnp.pad(ref_feats.astype(jnp.float32),
                    ((0, n_pad - n), (0, c_pad - c)))
    src_p = jnp.pad(src_feats.astype(jnp.float32),
                    ((0, m_pad - m), (0, c_pad - c)))

    gt_ref_idx = gt_node_corr_indices[:, 0].astype(jnp.int32)
    gt_src_idx = gt_node_corr_indices[:, 1].astype(jnp.int32)
    gt_ovl = gt_node_corr_overlaps.astype(jnp.float32)

    kernel = functools.partial(_coarse_matching_loss_kernel, n, m, k)

    cost = pl.CostEstimate(
        flops=2 * n_pad * m_pad * c_pad + 50 * n_pad * m_pad,
        transcendentals=4 * n_pad * m_pad + 6 * (n_pad + m_pad),
        bytes_accessed=4 * (n_pad * c_pad + m_pad * c_pad + 3 * k + 1),
    )

    loss = pl.pallas_call(
        kernel,
        out_shape=jax.ShapeDtypeStruct((1, 1), jnp.float32),
        in_specs=[
            pl.BlockSpec(memory_space=pltpu.MemorySpace.SMEM),   # gt ref indices
            pl.BlockSpec(memory_space=pltpu.MemorySpace.SMEM),   # gt src indices
            pl.BlockSpec(memory_space=pltpu.MemorySpace.SMEM),   # gt overlaps
            pl.BlockSpec(memory_space=pltpu.MemorySpace.VMEM),   # ref feats (padded)
            pl.BlockSpec(memory_space=pltpu.MemorySpace.VMEM),   # src feats (padded)
        ],
        out_specs=pl.BlockSpec(memory_space=pltpu.MemorySpace.VMEM),
        cost_estimate=cost,
    )(gt_ref_idx, gt_src_idx, gt_ovl, ref_p, src_p)
    return loss[0, 0]


def _reference_loss(ref_feats, src_feats, gt_idx, gt_ovl):
    """Pure-JAX reference mirroring the PyTorch module (for validation)."""
    n = ref_feats.shape[0]
    m = src_feats.shape[0]
    xy = ref_feats.astype(jnp.float32) @ src_feats.astype(jnp.float32).T
    feat_dists = jnp.sqrt(jnp.maximum(2.0 - 2.0 * xy, 0.0))
    overlaps = jnp.zeros((n, m), jnp.float32).at[gt_idx[:, 0], gt_idx[:, 1]].set(
        gt_ovl.astype(jnp.float32))
    pos_masks = overlaps > POSITIVE_OVERLAP
    neg_masks = overlaps == 0.0
    posf = pos_masks.astype(jnp.float32)
    negf = neg_masks.astype(jnp.float32)
    pos_scales = jnp.sqrt(overlaps * posf)
    pos_weights = jnp.maximum(
        feat_dists - 1e5 * (1.0 - posf) - POSITIVE_OPTIMAL, 0.0) * pos_scales
    neg_weights = jnp.maximum(
        NEGATIVE_OPTIMAL - (feat_dists + 1e5 * (1.0 - negf)), 0.0)
    pos_logits = LOG_SCALE * (feat_dists - POSITIVE_MARGIN) * pos_weights
    neg_logits = LOG_SCALE * (NEGATIVE_MARGIN - feat_dists) * neg_weights
    loss_row = jax.nn.softplus(jax.nn.logsumexp(pos_logits, axis=1)
                               + jax.nn.logsumexp(neg_logits, axis=1)) / LOG_SCALE
    loss_col = jax.nn.softplus(jax.nn.logsumexp(pos_logits, axis=0)
                               + jax.nn.logsumexp(neg_logits, axis=0)) / LOG_SCALE
    row_masks = (posf.sum(1) > 0) & (negf.sum(1) > 0)
    col_masks = (posf.sum(0) > 0) & (negf.sum(0) > 0)
    row_mean = jnp.sum(loss_row * row_masks) / jnp.sum(row_masks)
    col_mean = jnp.sum(loss_col * col_masks) / jnp.sum(col_masks)
    return 0.5 * (row_mean + col_mean)


if __name__ == "__main__":
    key = jax.random.PRNGKey(0)
    N, M, C, K = 24, 16, 32, 10   # ref nodes, src nodes, feat dim, gt correspondences

    k_ref, k_src, k_idx, k_ovl = jax.random.split(key, 4)

    ref_feats = jax.random.normal(k_ref, (N, C), dtype=jnp.float32)
    src_feats = jax.random.normal(k_src, (M, C), dtype=jnp.float32)
    # features are assumed L2-normalized (pairwise_distance(..., normalized=True))
    ref_feats = ref_feats / jnp.linalg.norm(ref_feats, axis=-1, keepdims=True)
    src_feats = src_feats / jnp.linalg.norm(src_feats, axis=-1, keepdims=True)

    # K distinct (ref, src) correspondence cells (matches real GT structure and
    # keeps "last write wins" scatter semantics unambiguous).
    flat = jax.random.permutation(k_idx, N * M)[:K]
    gt_node_corr_indices = jnp.stack([flat // M, flat % M], axis=1).astype(jnp.int32)
    # overlaps in (0.05, 1.0) -> mix of above/below positive_overlap threshold
    gt_node_corr_overlaps = jax.random.uniform(
        k_ovl, (K,), minval=0.05, maxval=1.0, dtype=jnp.float32)

    loss = coarse_matching_loss(ref_feats, src_feats, gt_node_corr_indices,
                                gt_node_corr_overlaps)
    jax.block_until_ready(loss)

    expected = _reference_loss(ref_feats, src_feats, gt_node_corr_indices,
                               gt_node_corr_overlaps)

    assert loss.shape == () and bool(jnp.isfinite(loss))
    assert jnp.allclose(loss, expected, rtol=1e-3, atol=1e-3), (loss, expected)
    print("KERNEL_OK")
</pallas_src>

<mosaic_0001>
module attributes {stable_mosaic.version = 11 : i64} {
  func.func @_coarse_matching_loss_kernel(%arg0: memref<10xi32, #tpu.memory_space<smem>>, %arg1: memref<10xi32, #tpu.memory_space<smem>>, %arg2: memref<10xf32, #tpu.memory_space<smem>>, %arg3: memref<24x128xf32, #tpu.memory_space<vmem>>, %arg4: memref<128x128xf32, #tpu.memory_space<vmem>>, %arg5: memref<1x1xf32, #tpu.memory_space<vmem>>) attributes {dimension_semantics = [], scalar_prefetch = 0 : i64, scratch_operands = 0 : i64, tpu.core_type = #tpu.core_type<tc>} {
    %c0 = arith.constant 0 : index
    %c0_0 = arith.constant 0 : index
    %0 = vector.load %arg3[%c0, %c0_0] : memref<24x128xf32, #tpu.memory_space<vmem>>, vector<24x128xf32>
    %c0_1 = arith.constant 0 : index
    %c0_2 = arith.constant 0 : index
    %1 = vector.load %arg4[%c0_1, %c0_2] : memref<128x128xf32, #tpu.memory_space<vmem>>, vector<128x128xf32>
    %cst = arith.constant dense<0.000000e+00> : vector<24x128xf32>
    %2 = tpu.matmul %0, %1, %cst {dimension_numbers = #tpu.dot_dimension_numbers<[1], [1], [0], [0], [0, 0, 1, 0], [], []>} : vector<24x128xf32>, vector<128x128xf32>, vector<24x128xf32> -> vector<24x128xf32>
    %cst_3 = arith.constant 2.000000e+00 : f32
    %3 = vector.broadcast %cst_3 : f32 to vector<24x128xf32>
    %4 = arith.mulf %3, %2 : vector<24x128xf32>
    %cst_4 = arith.constant 2.000000e+00 : f32
    %5 = vector.broadcast %cst_4 : f32 to vector<24x128xf32>
    %6 = arith.subf %5, %4 : vector<24x128xf32>
    %cst_5 = arith.constant 0.000000e+00 : f32
    %7 = vector.broadcast %cst_5 : f32 to vector<24x128xf32>
    %8 = arith.maximumf %6, %7 : vector<24x128xf32>
    %9 = math.sqrt %8 : vector<24x128xf32>
    %10 = tpu.iota {dimensions = array<i32: 0>} : vector<24x128xi32>
    %11 = tpu.iota {dimensions = array<i32: 1>} : vector<24x128xi32>
    %cst_6 = arith.constant 0.000000e+00 : f32
    %12 = vector.broadcast %cst_6 : f32 to vector<24x128xf32>
    %c0_7 = arith.constant 0 : index
    %13 = memref.load %arg0[%c0_7] : memref<10xi32, #tpu.memory_space<smem>>
    %14 = vector.broadcast %13 : i32 to vector<24x128xi32>
    %15 = arith.cmpi eq, %10, %14 : vector<24x128xi32>
    %c0_8 = arith.constant 0 : index
    %16 = memref.load %arg1[%c0_8] : memref<10xi32, #tpu.memory_space<smem>>
    %17 = vector.broadcast %16 : i32 to vector<24x128xi32>
    %18 = arith.cmpi eq, %11, %17 : vector<24x128xi32>
    %19 = arith.andi %15, %18 : vector<24x128xi1>
    %c0_9 = arith.constant 0 : index
    %20 = memref.load %arg2[%c0_9] : memref<10xf32, #tpu.memory_space<smem>>
    %21 = vector.broadcast %20 : f32 to vector<24x128xf32>
    %22 = arith.select %19, %21, %12 : vector<24x128xi1>, vector<24x128xf32>
    %c1 = arith.constant 1 : index
    %23 = memref.load %arg0[%c1] : memref<10xi32, #tpu.memory_space<smem>>
    %24 = vector.broadcast %23 : i32 to vector<24x128xi32>
    %25 = arith.cmpi eq, %10, %24 : vector<24x128xi32>
    %c1_10 = arith.constant 1 : index
    %26 = memref.load %arg1[%c1_10] : memref<10xi32, #tpu.memory_space<smem>>
    %27 = vector.broadcast %26 : i32 to vector<24x128xi32>
    %28 = arith.cmpi eq, %11, %27 : vector<24x128xi32>
    %29 = arith.andi %25, %28 : vector<24x128xi1>
    %c1_11 = arith.constant 1 : index
    %30 = memref.load %arg2[%c1_11] : memref<10xf32, #tpu.memory_space<smem>>
    %31 = vector.broadcast %30 : f32 to vector<24x128xf32>
    %32 = arith.select %29, %31, %22 : vector<24x128xi1>, vector<24x128xf32>
    %c2 = arith.constant 2 : index
    %33 = memref.load %arg0[%c2] : memref<10xi32, #tpu.memory_space<smem>>
    %34 = vector.broadcast %33 : i32 to vector<24x128xi32>
    %35 = arith.cmpi eq, %10, %34 : vector<24x128xi32>
    %c2_12 = arith.constant 2 : index
    %36 = memref.load %arg1[%c2_12] : memref<10xi32, #tpu.memory_space<smem>>
    %37 = vector.broadcast %36 : i32 to vector<24x128xi32>
    %38 = arith.cmpi eq, %11, %37 : vector<24x128xi32>
    %39 = arith.andi %35, %38 : vector<24x128xi1>
    %c2_13 = arith.constant 2 : index
    %40 = memref.load %arg2[%c2_13] : memref<10xf32, #tpu.memory_space<smem>>
    %41 = vector.broadcast %40 : f32 to vector<24x128xf32>
    %42 = arith.select %39, %41, %32 : vector<24x128xi1>, vector<24x128xf32>
    %c3 = arith.constant 3 : index
    %43 = memref.load %arg0[%c3] : memref<10xi32, #tpu.memory_space<smem>>
    %44 = vector.broadcast %43 : i32 to vector<24x128xi32>
    %45 = arith.cmpi eq, %10, %44 : vector<24x128xi32>
    %c3_14 = arith.constant 3 : index
    %46 = memref.load %arg1[%c3_14] : memref<10xi32, #tpu.memory_space<smem>>
    %47 = vector.broadcast %46 : i32 to vector<24x128xi32>
    %48 = arith.cmpi eq, %11, %47 : vector<24x128xi32>
    %49 = arith.andi %45, %48 : vector<24x128xi1>
    %c3_15 = arith.constant 3 : index
    %50 = memref.load %arg2[%c3_15] : memref<10xf32, #tpu.memory_space<smem>>
    %51 = vector.broadcast %50 : f32 to vector<24x128xf32>
    %52 = arith.select %49, %51, %42 : vector<24x128xi1>, vector<24x128xf32>
    %c4 = arith.constant 4 : index
    %53 = memref.load %arg0[%c4] : memref<10xi32, #tpu.memory_space<smem>>
    %54 = vector.broadcast %53 : i32 to vector<24x128xi32>
    %55 = arith.cmpi eq, %10, %54 : vector<24x128xi32>
    %c4_16 = arith.constant 4 : index
    %56 = memref.load %arg1[%c4_16] : memref<10xi32, #tpu.memory_space<smem>>
    %57 = vector.broadcast %56 : i32 to vector<24x128xi32>
    %58 = arith.cmpi eq, %11, %57 : vector<24x128xi32>
    %59 = arith.andi %55, %58 : vector<24x128xi1>
    %c4_17 = arith.constant 4 : index
    %60 = memref.load %arg2[%c4_17] : memref<10xf32, #tpu.memory_space<smem>>
    %61 = vector.broadcast %60 : f32 to vector<24x128xf32>
    %62 = arith.select %59, %61, %52 : vector<24x128xi1>, vector<24x128xf32>
    %c5 = arith.constant 5 : index
    %63 = memref.load %arg0[%c5] : memref<10xi32, #tpu.memory_space<smem>>
    %64 = vector.broadcast %63 : i32 to vector<24x128xi32>
    %65 = arith.cmpi eq, %10, %64 : vector<24x128xi32>
    %c5_18 = arith.constant 5 : index
    %66 = memref.load %arg1[%c5_18] : memref<10xi32, #tpu.memory_space<smem>>
    %67 = vector.broadcast %66 : i32 to vector<24x128xi32>
    %68 = arith.cmpi eq, %11, %67 : vector<24x128xi32>
    %69 = arith.andi %65, %68 : vector<24x128xi1>
    %c5_19 = arith.constant 5 : index
    %70 = memref.load %arg2[%c5_19] : memref<10xf32, #tpu.memory_space<smem>>
    %71 = vector.broadcast %70 : f32 to vector<24x128xf32>
    %72 = arith.select %69, %71, %62 : vector<24x128xi1>, vector<24x128xf32>
    %c6 = arith.constant 6 : index
    %73 = memref.load %arg0[%c6] : memref<10xi32, #tpu.memory_space<smem>>
    %74 = vector.broadcast %73 : i32 to vector<24x128xi32>
    %75 = arith.cmpi eq, %10, %74 : vector<24x128xi32>
    %c6_20 = arith.constant 6 : index
    %76 = memref.load %arg1[%c6_20] : memref<10xi32, #tpu.memory_space<smem>>
    %77 = vector.broadcast %76 : i32 to vector<24x128xi32>
    %78 = arith.cmpi eq, %11, %77 : vector<24x128xi32>
    %79 = arith.andi %75, %78 : vector<24x128xi1>
    %c6_21 = arith.constant 6 : index
    %80 = memref.load %arg2[%c6_21] : memref<10xf32, #tpu.memory_space<smem>>
    %81 = vector.broadcast %80 : f32 to vector<24x128xf32>
    %82 = arith.select %79, %81, %72 : vector<24x128xi1>, vector<24x128xf32>
    %c7 = arith.constant 7 : index
    %83 = memref.load %arg0[%c7] : memref<10xi32, #tpu.memory_space<smem>>
    %84 = vector.broadcast %83 : i32 to vector<24x128xi32>
    %85 = arith.cmpi eq, %10, %84 : vector<24x128xi32>
    %c7_22 = arith.constant 7 : index
    %86 = memref.load %arg1[%c7_22] : memref<10xi32, #tpu.memory_space<smem>>
    %87 = vector.broadcast %86 : i32 to vector<24x128xi32>
    %88 = arith.cmpi eq, %11, %87 : vector<24x128xi32>
    %89 = arith.andi %85, %88 : vector<24x128xi1>
    %c7_23 = arith.constant 7 : index
    %90 = memref.load %arg2[%c7_23] : memref<10xf32, #tpu.memory_space<smem>>
    %91 = vector.broadcast %90 : f32 to vector<24x128xf32>
    %92 = arith.select %89, %91, %82 : vector<24x128xi1>, vector<24x128xf32>
    %c8 = arith.constant 8 : index
    %93 = memref.load %arg0[%c8] : memref<10xi32, #tpu.memory_space<smem>>
    %94 = vector.broadcast %93 : i32 to vector<24x128xi32>
    %95 = arith.cmpi eq, %10, %94 : vector<24x128xi32>
    %c8_24 = arith.constant 8 : index
    %96 = memref.load %arg1[%c8_24] : memref<10xi32, #tpu.memory_space<smem>>
    %97 = vector.broadcast %96 : i32 to vector<24x128xi32>
    %98 = arith.cmpi eq, %11, %97 : vector<24x128xi32>
    %99 = arith.andi %95, %98 : vector<24x128xi1>
    %c8_25 = arith.constant 8 : index
    %100 = memref.load %arg2[%c8_25] : memref<10xf32, #tpu.memory_space<smem>>
    %101 = vector.broadcast %100 : f32 to vector<24x128xf32>
    %102 = arith.select %99, %101, %92 : vector<24x128xi1>, vector<24x128xf32>
    %c9 = arith.constant 9 : index
    %103 = memref.load %arg0[%c9] : memref<10xi32, #tpu.memory_space<smem>>
    %104 = vector.broadcast %103 : i32 to vector<24x128xi32>
    %105 = arith.cmpi eq, %10, %104 : vector<24x128xi32>
    %c9_26 = arith.constant 9 : index
    %106 = memref.load %arg1[%c9_26] : memref<10xi32, #tpu.memory_space<smem>>
    %107 = vector.broadcast %106 : i32 to vector<24x128xi32>
    %108 = arith.cmpi eq, %11, %107 : vector<24x128xi32>
    %109 = arith.andi %105, %108 : vector<24x128xi1>
    %c9_27 = arith.constant 9 : index
    %110 = memref.load %arg2[%c9_27] : memref<10xf32, #tpu.memory_space<smem>>
    %111 = vector.broadcast %110 : f32 to vector<24x128xf32>
    %112 = arith.select %109, %111, %102 : vector<24x128xi1>, vector<24x128xf32>
    %c24_i32 = arith.constant 24 : i32
    %113 = vector.broadcast %c24_i32 : i32 to vector<24x128xi32>
    %114 = arith.cmpi slt, %10, %113 : vector<24x128xi32>
    %c16_i32 = arith.constant 16 : i32
    %115 = vector.broadcast %c16_i32 : i32 to vector<24x128xi32>
    %116 = arith.cmpi slt, %11, %115 : vector<24x128xi32>
    %117 = arith.andi %114, %116 : vector<24x128xi1>
    %cst_28 = arith.constant 1.000000e-01 : f32
    %118 = vector.broadcast %cst_28 : f32 to vector<24x128xf32>
    %119 = arith.cmpf ogt, %112, %118 : vector<24x128xf32>
    %120 = arith.andi %119, %117 : vector<24x128xi1>
    %cst_29 = arith.constant 0.000000e+00 : f32
    %121 = vector.broadcast %cst_29 : f32 to vector<24x128xf32>
    %122 = arith.cmpf oeq, %112, %121 : vector<24x128xf32>
    %123 = arith.andi %122, %117 : vector<24x128xi1>
    %124 = arith.extui %120 : vector<24x128xi1> to vector<24x128xi32>
    %125 = arith.sitofp %124 : vector<24x128xi32> to vector<24x128xf32>
    %126 = arith.extui %123 : vector<24x128xi1> to vector<24x128xi32>
    %127 = arith.sitofp %126 : vector<24x128xi32> to vector<24x128xf32>
    %128 = arith.mulf %112, %125 : vector<24x128xf32>
    %129 = math.sqrt %128 : vector<24x128xf32>
    %cst_30 = arith.constant 1.000000e+00 : f32
    %130 = vector.broadcast %cst_30 : f32 to vector<24x128xf32>
    %131 = arith.subf %130, %125 : vector<24x128xf32>
    %cst_31 = arith.constant 1.000000e+05 : f32
    %132 = vector.broadcast %cst_31 : f32 to vector<24x128xf32>
    %133 = arith.mulf %132, %131 : vector<24x128xf32>
    %134 = arith.subf %9, %133 : vector<24x128xf32>
    %cst_32 = arith.constant 1.000000e-01 : f32
    %135 = vector.broadcast %cst_32 : f32 to vector<24x128xf32>
    %136 = arith.subf %134, %135 : vector<24x128xf32>
    %cst_33 = arith.constant 0.000000e+00 : f32
    %137 = vector.broadcast %cst_33 : f32 to vector<24x128xf32>
    %138 = arith.maximumf %136, %137 : vector<24x128xf32>
    %139 = arith.mulf %138, %129 : vector<24x128xf32>
    %cst_34 = arith.constant 1.000000e+00 : f32
    %140 = vector.broadcast %cst_34 : f32 to vector<24x128xf32>
    %141 = arith.subf %140, %127 : vector<24x128xf32>
    %cst_35 = arith.constant 1.000000e+05 : f32
    %142 = vector.broadcast %cst_35 : f32 to vector<24x128xf32>
    %143 = arith.mulf %142, %141 : vector<24x128xf32>
    %144 = arith.addf %9, %143 : vector<24x128xf32>
    %cst_36 = arith.constant 1.400000e+00 : f32
    %145 = vector.broadcast %cst_36 : f32 to vector<24x128xf32>
    %146 = arith.subf %145, %144 : vector<24x128xf32>
    %cst_37 = arith.constant 0.000000e+00 : f32
    %147 = vector.broadcast %cst_37 : f32 to vector<24x128xf32>
    %148 = arith.maximumf %146, %147 : vector<24x128xf32>
    %cst_38 = arith.constant 1.000000e-01 : f32
    %149 = vector.broadcast %cst_38 : f32 to vector<24x128xf32>
    %150 = arith.subf %9, %149 : vector<24x128xf32>
    %cst_39 = arith.constant 2.400000e+01 : f32
    %151 = vector.broadcast %cst_39 : f32 to vector<24x128xf32>
    %152 = arith.mulf %151, %150 : vector<24x128xf32>
    %153 = arith.mulf %152, %139 : vector<24x128xf32>
    %cst_40 = arith.constant 1.400000e+00 : f32
    %154 = vector.broadcast %cst_40 : f32 to vector<24x128xf32>
    %155 = arith.subf %154, %9 : vector<24x128xf32>
    %cst_41 = arith.constant 2.400000e+01 : f32
    %156 = vector.broadcast %cst_41 : f32 to vector<24x128xf32>
    %157 = arith.mulf %156, %155 : vector<24x128xf32>
    %158 = arith.mulf %157, %148 : vector<24x128xf32>
    %cst_42 = arith.constant -1.000000e+30 : f32
    %159 = vector.broadcast %cst_42 : f32 to vector<24x128xf32>
    %160 = arith.select %117, %153, %159 : vector<24x128xi1>, vector<24x128xf32>
    %cst_43 = arith.constant -1.000000e+30 : f32
    %161 = vector.broadcast %cst_43 : f32 to vector<24x128xf32>
    %162 = arith.select %117, %158, %161 : vector<24x128xi1>, vector<24x128xf32>
    %cst_44 = arith.constant dense<0xFF800000> : vector<24xf32>
    %163 = vector.multi_reduction <maximumf>, %160, %cst_44 [1] : vector<24x128xf32> to vector<24xf32>
    %164 = vector.shape_cast %163 : vector<24xf32> to vector<24x1xf32>
    %165 = vector.broadcast %164 : vector<24x1xf32> to vector<24x128xf32>
    %166 = arith.subf %160, %165 : vector<24x128xf32>
    %167 = math.exp %166 : vector<24x128xf32>
    %cst_45 = arith.constant dense<0.000000e+00> : vector<24xf32>
    %168 = vector.multi_reduction <add>, %167, %cst_45 [1] : vector<24x128xf32> to vector<24xf32>
    %169 = vector.shape_cast %168 : vector<24xf32> to vector<24x1xf32>
    %170 = math.log %169 : vector<24x1xf32>
    %171 = arith.addf %164, %170 : vector<24x1xf32>
    %cst_46 = arith.constant dense<0xFF800000> : vector<24xf32>
    %172 = vector.multi_reduction <maximumf>, %162, %cst_46 [1] : vector<24x128xf32> to vector<24xf32>
    %173 = vector.shape_cast %172 : vector<24xf32> to vector<24x1xf32>
    %174 = vector.broadcast %173 : vector<24x1xf32> to vector<24x128xf32>
    %175 = arith.subf %162, %174 : vector<24x128xf32>
    %176 = math.exp %175 : vector<24x128xf32>
    %cst_47 = arith.constant dense<0.000000e+00> : vector<24xf32>
    %177 = vector.multi_reduction <add>, %176, %cst_47 [1] : vector<24x128xf32> to vector<24xf32>
    %178 = vector.shape_cast %177 : vector<24xf32> to vector<24x1xf32>
    %179 = math.log %178 : vector<24x1xf32>
    %180 = arith.addf %173, %179 : vector<24x1xf32>
    %cst_48 = arith.constant dense<0xFF800000> : vector<128xf32>
    %181 = vector.multi_reduction <maximumf>, %160, %cst_48 [0] : vector<24x128xf32> to vector<128xf32>
    %182 = vector.shape_cast %181 : vector<128xf32> to vector<1x128xf32>
    %183 = vector.broadcast %182 : vector<1x128xf32> to vector<24x128xf32>
    %184 = arith.subf %160, %183 : vector<24x128xf32>
    %185 = math.exp %184 : vector<24x128xf32>
    %cst_49 = arith.constant dense<0.000000e+00> : vector<128xf32>
    %186 = vector.multi_reduction <add>, %185, %cst_49 [0] : vector<24x128xf32> to vector<128xf32>
    %187 = vector.shape_cast %186 : vector<128xf32> to vector<1x128xf32>
    %188 = math.log %187 : vector<1x128xf32>
    %189 = arith.addf %182, %188 : vector<1x128xf32>
    %cst_50 = arith.constant dense<0xFF800000> : vector<128xf32>
    %190 = vector.multi_reduction <maximumf>, %162, %cst_50 [0] : vector<24x128xf32> to vector<128xf32>
    %191 = vector.shape_cast %190 : vector<128xf32> to vector<1x128xf32>
    %192 = vector.broadcast %191 : vector<1x128xf32> to vector<24x128xf32>
    %193 = arith.subf %162, %192 : vector<24x128xf32>
    %194 = math.exp %193 : vector<24x128xf32>
    %cst_51 = arith.constant dense<0.000000e+00> : vector<128xf32>
    %195 = vector.multi_reduction <add>, %194, %cst_51 [0] : vector<24x128xf32> to vector<128xf32>
    %196 = vector.shape_cast %195 : vector<128xf32> to vector<1x128xf32>
    %197 = math.log %196 : vector<1x128xf32>
    %198 = arith.addf %191, %197 : vector<1x128xf32>
    %199 = arith.addf %171, %180 : vector<24x1xf32>
    %cst_52 = arith.constant 0.000000e+00 : f32
    %200 = vector.broadcast %cst_52 : f32 to vector<24x1xf32>
    %201 = arith.maximumf %199, %200 : vector<24x1xf32>
    %202 = math.absf %199 : vector<24x1xf32>
    %cst_53 = arith.constant 0.000000e+00 : f32
    %203 = vector.broadcast %cst_53 : f32 to vector<24x1xf32>
    %204 = arith.subf %203, %202 : vector<24x1xf32>
    %205 = math.exp %204 : vector<24x1xf32>
    %206 = math.log1p %205 : vector<24x1xf32>
    %207 = arith.addf %201, %206 : vector<24x1xf32>
    %cst_54 = arith.constant 2.400000e+01 : f32
    %208 = vector.broadcast %cst_54 : f32 to vector<24x1xf32>
    %209 = arith.divf %207, %208 : vector<24x1xf32>
    %210 = arith.addf %189, %198 : vector<1x128xf32>
    %cst_55 = arith.constant 0.000000e+00 : f32
    %211 = vector.broadcast %cst_55 : f32 to vector<1x128xf32>
    %212 = arith.maximumf %210, %211 : vector<1x128xf32>
    %213 = math.absf %210 : vector<1x128xf32>
    %cst_56 = arith.constant 0.000000e+00 : f32
    %214 = vector.broadcast %cst_56 : f32 to vector<1x128xf32>
    %215 = arith.subf %214, %213 : vector<1x128xf32>
    %216 = math.exp %215 : vector<1x128xf32>
    %217 = math.log1p %216 : vector<1x128xf32>
    %218 = arith.addf %212, %217 : vector<1x128xf32>
    %cst_57 = arith.constant 2.400000e+01 : f32
    %219 = vector.broadcast %cst_57 : f32 to vector<1x128xf32>
    %220 = arith.divf %218, %219 : vector<1x128xf32>
    %cst_58 = arith.constant dense<0.000000e+00> : vector<24xf32>
    %221 = vector.multi_reduction <add>, %125, %cst_58 [1] : vector<24x128xf32> to vector<24xf32>
    %222 = vector.shape_cast %221 : vector<24xf32> to vector<24x1xf32>
    %cst_59 = arith.constant 0.000000e+00 : f32
    %223 = vector.broadcast %cst_59 : f32 to vector<24x1xf32>
    %224 = arith.cmpf ogt, %222, %223 : vector<24x1xf32>
    %cst_60 = arith.constant dense<0.000000e+00> : vector<24xf32>
    %225 = vector.multi_reduction <add>, %127, %cst_60 [1] : vector<24x128xf32> to vector<24xf32>
    %226 = vector.shape_cast %225 : vector<24xf32> to vector<24x1xf32>
    %cst_61 = arith.constant 0.000000e+00 : f32
    %227 = vector.broadcast %cst_61 : f32 to vector<24x1xf32>
    %228 = arith.cmpf ogt, %226, %227 : vector<24x1xf32>
    %229 = arith.andi %224, %228 : vector<24x1xi1>
    %230 = arith.extui %229 : vector<24x1xi1> to vector<24x1xi32>
    %231 = arith.sitofp %230 : vector<24x1xi32> to vector<24x1xf32>
    %cst_62 = arith.constant dense<0.000000e+00> : vector<128xf32>
    %232 = vector.multi_reduction <add>, %125, %cst_62 [0] : vector<24x128xf32> to vector<128xf32>
    %233 = vector.shape_cast %232 : vector<128xf32> to vector<1x128xf32>
    %cst_63 = arith.constant 0.000000e+00 : f32
    %234 = vector.broadcast %cst_63 : f32 to vector<1x128xf32>
    %235 = arith.cmpf ogt, %233, %234 : vector<1x128xf32>
    %cst_64 = arith.constant dense<0.000000e+00> : vector<128xf32>
    %236 = vector.multi_reduction <add>, %127, %cst_64 [0] : vector<24x128xf32> to vector<128xf32>
    %237 = vector.shape_cast %236 : vector<128xf32> to vector<1x128xf32>
    %cst_65 = arith.constant 0.000000e+00 : f32
    %238 = vector.broadcast %cst_65 : f32 to vector<1x128xf32>
    %239 = arith.cmpf ogt, %237, %238 : vector<1x128xf32>
    %240 = arith.andi %235, %239 : vector<1x128xi1>
    %241 = arith.extui %240 : vector<1x128xi1> to vector<1x128xi32>
    %242 = arith.sitofp %241 : vector<1x128xi32> to vector<1x128xf32>
    %243 = arith.mulf %209, %231 : vector<24x1xf32>
    %cst_66 = arith.constant dense<0.000000e+00> : vector<1xf32>
    %244 = vector.multi_reduction <add>, %243, %cst_66 [0] : vector<24x1xf32> to vector<1xf32>
    %245 = vector.shape_cast %244 : vector<1xf32> to vector<1x1xf32>
    %cst_67 = arith.constant dense<0.000000e+00> : vector<1xf32>
    %246 = vector.multi_reduction <add>, %231, %cst_67 [0] : vector<24x1xf32> to vector<1xf32>
    %247 = vector.shape_cast %246 : vector<1xf32> to vector<1x1xf32>
    %248 = arith.mulf %220, %242 : vector<1x128xf32>
    %cst_68 = arith.constant dense<0.000000e+00> : vector<1xf32>
    %249 = vector.multi_reduction <add>, %248, %cst_68 [1] : vector<1x128xf32> to vector<1xf32>
    %250 = vector.shape_cast %249 : vector<1xf32> to vector<1x1xf32>
    %cst_69 = arith.constant dense<0.000000e+00> : vector<1xf32>
    %251 = vector.multi_reduction <add>, %242, %cst_69 [1] : vector<1x128xf32> to vector<1xf32>
    %252 = vector.shape_cast %251 : vector<1xf32> to vector<1x1xf32>
    %253 = arith.divf %245, %247 : vector<1x1xf32>
    %254 = arith.divf %250, %252 : vector<1x1xf32>
    %255 = arith.addf %253, %254 : vector<1x1xf32>
    %cst_70 = arith.constant 5.000000e-01 : f32
    %256 = vector.broadcast %cst_70 : f32 to vector<1x1xf32>
    %257 = arith.mulf %256, %255 : vector<1x1xf32>
    %c0_71 = arith.constant 0 : index
    %c0_72 = arith.constant 0 : index
    %258 = vector.load %arg5[%c0_71, %c0_72] : memref<1x1xf32, #tpu.memory_space<vmem>>, vector<1x1xf32>
    tpu.vector_store %arg5[%c0_71, %c0_72], %257 {strides = array<i32>} : memref<1x1xf32, #tpu.memory_space<vmem>>, vector<1x1xf32>,
    return
  }
}

</mosaic_0001>

<llo_original>
// kernel: coarse_matching_loss.1
$region0: #{coarse_matching_loss.1}
  #allocation0 [shape = 'u32[]', space=smem, size = 0x4, offset = 0x4, fixed_abs, tag = 'smem constant byte address 0x4 - core index']
  #allocation1 [shape = 'u32[144,128]{1,0:T(1,128)}', space=vmem, size = 0x12000, scoped, tag = 'internal scratch']
  %s0 = inlined_call_operand.vmem [shape: s32[10], index: 0, kind: input, shape index: {}]
  %s1 = inlined_call_operand.vmem [shape: s32[10], index: 1, kind: input, shape index: {}]
  %s2 = inlined_call_operand.vmem [shape: f32[10], index: 2, kind: input, shape index: {}]
  %s3 = inlined_call_operand.vmem [shape: f32[24,128], index: 3, kind: input, shape index: {}]
  %s4 = inlined_call_operand.vmem [shape: f32[128,128], index: 4, kind: input, shape index: {}]
  %s5 = inlined_call_operand.hbm [shape: f32[1,1], index: 5, kind: output, shape index: {}]
  %s6 = sld [smem:[#allocation0]]
  $region42: #{coarse_matching_loss.1} parent=0
    _
  %s8 = ssub.s32 1, %s6
  %s9 = scalar_select 0, %s8, %s6
  $region1: #{coarse_matching_loss.1} parent=0
    #allocation2 [shape = 'u8[512]{0}', space=smem, size = 0x200, scoped, tag = 'input window, operand 0, single buffered']
    #allocation3 [shape = 's32[1]{0}', space=sflag, size = 0x4, scoped, tag = 'scoped memory for coarse_matching_loss.1']
    #allocation4 [shape = 's32[1]{0}', space=sflag, size = 0x4, scoped, tag = 'scoped memory for coarse_matching_loss.1']
    #allocation5 [shape = 'u8[512]{0}', space=smem, size = 0x200, scoped, tag = 'input window, operand 1, single buffered']
    #allocation6 [shape = 's32[1]{0}', space=sflag, size = 0x4, scoped, tag = 'scoped memory for coarse_matching_loss.1']
    #allocation7 [shape = 'u8[512]{0}', space=smem, size = 0x200, scoped, tag = 'input window, operand 2, single buffered']
    #allocation8 [shape = 'u8[512]{0}', space=vmem, size = 0x400, scoped, tag = 'output window, operand 0, single buffered']
    %10 = vsyncpa [#allocation4], 0
    %11 = vsyncpa [#allocation6], 0
    %12 = vsyncpa [#allocation3], 0
    // Predicated region
    $region2: #{coarse_matching_loss.1} parent=1 // pred_check
      _
    $region3: #{coarse_matching_loss.1} parent=1 // pred_check_branch
      %14 = sbr.rel (0) target = $region5
    $region4: #{coarse_matching_loss.1} parent=1 // pred_region
      %s16 = ssub.s32 16, 16
      %17 = vsyncadd [#allocation4], %s16
      %s19 = sshll.u32 %s0, 4
      %s20 = int_to_ptr.vmem [resolvable:$true] %s19
      %22 = dma.vmem_to_smem %s20, 16, [#allocation2], [#allocation4]
    $region5: #{coarse_matching_loss.1} parent=1 // pred_fallthru
      _
    // Predicated region
    $region6: #{coarse_matching_loss.1} parent=1 // pred_check
      _
    $region7: #{coarse_matching_loss.1} parent=1 // pred_check_branch
      %24 = sbr.rel (0) target = $region9
    $region8: #{coarse_matching_loss.1} parent=1 // pred_region
      %s26 = ssub.s32 16, 16
      %27 = vsyncadd [#allocation6], %s26
      %s29 = sshll.u32 %s1, 4
      %s30 = int_to_ptr.vmem [resolvable:$true] %s29
      %32 = dma.vmem_to_smem %s30, 16, [#allocation5], [#allocation6]
    $region9: #{coarse_matching_loss.1} parent=1 // pred_fallthru
      _
    // Predicated region
    $region10: #{coarse_matching_loss.1} parent=1 // pred_check
      _
    $region11: #{coarse_matching_loss.1} parent=1 // pred_check_branch
      %34 = sbr.rel (0) target = $region13
    $region12: #{coarse_matching_loss.1} parent=1 // pred_region
      %s36 = ssub.s32 16, 16
      %37 = vsyncadd [#allocation6], %s36
      %s39 = sshll.u32 %s2, 4
      %s40 = int_to_ptr.vmem [resolvable:$true] %s39
      %42 = dma.vmem_to_smem %s40, 16, [#allocation7], [#allocation6]
    $region13: #{coarse_matching_loss.1} parent=1 // pred_fallthru
      _
    // Predicated region
    $region14: #{coarse_matching_loss.1} parent=1 // pred_check
      _
    $region15: #{coarse_matching_loss.1} parent=1 // pred_check_branch
      %44 = sbr.rel (0) target = $region17
    $region16: #{coarse_matching_loss.1} parent=1 // pred_region
      _
    $region17: #{coarse_matching_loss.1} parent=1 // pred_fallthru
      _
    // Predicated region
    $region18: #{coarse_matching_loss.1} parent=1 // pred_check
      _
    $region19: #{coarse_matching_loss.1} parent=1 // pred_check_branch
      %46 = sbr.rel (0) target = $region21
    $region20: #{coarse_matching_loss.1} parent=1 // pred_region
      _
    $region21: #{coarse_matching_loss.1} parent=1 // pred_fallthru
      _
    // Predicated region
    $region22: #{coarse_matching_loss.1} parent=1 // pred_check
      _
    $region23: #{coarse_matching_loss.1} parent=1 // pred_check_branch
      %48 = sbr.rel (0) target = $region25
    $region24: #{coarse_matching_loss.1} parent=1 // pred_region
      %49 = dma.done [#allocation4], 16
    $region25: #{coarse_matching_loss.1} parent=1 // pred_fallthru
      _
    // Predicated region
    $region26: #{coarse_matching_loss.1} parent=1 // pred_check
      _
    $region27: #{coarse_matching_loss.1} parent=1 // pred_check_branch
      %51 = sbr.rel (0) target = $region29
    $region28: #{coarse_matching_loss.1} parent=1 // pred_region
      %52 = dma.done [#allocation6], 16
    $region29: #{coarse_matching_loss.1} parent=1 // pred_fallthru
      _
    // Predicated region
    $region30: #{coarse_matching_loss.1} parent=1 // pred_check
      _
    $region31: #{coarse_matching_loss.1} parent=1 // pred_check_branch
      %54 = sbr.rel (0) target = $region33
    $region32: #{coarse_matching_loss.1} parent=1 // pred_region
      %55 = dma.done [#allocation6], 16
    $region33: #{coarse_matching_loss.1} parent=1 // pred_fallthru
      _
    %56 = sfence
    %v57 = vld [vmem:[%s3] sm:$0xff]
    %v58 = vld [vmem:[%s3 + $0x8] sm:$0xff]
    %v59 = vld [vmem:[%s3 + $0x10] sm:$0xff]
    %v60 = vld [vmem:[%s4] sm:$0xff]
    %v61 = vld [vmem:[%s4 + $0x8] sm:$0xff]
    %v62 = vld [vmem:[%s4 + $0x10] sm:$0xff]
    %v63 = vld [vmem:[%s4 + $0x18] sm:$0xff]
    %v64 = vld [vmem:[%s4 + $0x20] sm:$0xff]
    %v65 = vld [vmem:[%s4 + $0x28] sm:$0xff]
    %v66 = vld [vmem:[%s4 + $0x30] sm:$0xff]
    %v67 = vld [vmem:[%s4 + $0x38] sm:$0xff]
    %v68 = vld [vmem:[%s4 + $0x40] sm:$0xff]
    %v69 = vld [vmem:[%s4 + $0x48] sm:$0xff]
    %v70 = vld [vmem:[%s4 + $0x50] sm:$0xff]
    %v71 = vld [vmem:[%s4 + $0x58] sm:$0xff]
    %v72 = vld [vmem:[%s4 + $0x60] sm:$0xff]
    %v73 = vld [vmem:[%s4 + $0x68] sm:$0xff]
    %v74 = vld [vmem:[%s4 + $0x70] sm:$0xff]
    %v75 = vld [vmem:[%s4 + $0x78] sm:$0xff]
    %76 = vmatprep.subr.mxu0 0.0
    %77 = vmatpush1.xpose.msra.mxu0 %v75
    %78 = vmatprep.subr.mxu0 0.0
    %79 = vmatpush1.xpose.msra.mxu0 %v74
    %80 = vmatprep.subr.mxu0 0.0
    %81 = vmatpush1.xpose.msra.mxu0 %v73
    %82 = vmatprep.subr.mxu0 0.0
    %83 = vmatpush1.xpose.msra.mxu0 %v72
    %84 = vmatprep.subr.mxu0 0.0
    %85 = vmatpush1.xpose.msra.mxu0 %v71
    %86 = vmatprep.subr.mxu0 0.0
    %87 = vmatpush1.xpose.msra.mxu0 %v70
    %88 = vmatprep.subr.mxu0 0.0
    %89 = vmatpush1.xpose.msra.mxu0 %v69
    %90 = vmatprep.subr.mxu0 0.0
    %91 = vmatpush1.xpose.msra.mxu0 %v68
    %92 = vmatprep.subr.mxu0 0.0
    %93 = vmatpush1.xpose.msra.mxu0 %v67
    %94 = vmatprep.subr.mxu0 0.0
    %95 = vmatpush1.xpose.msra.mxu0 %v66
    %96 = vmatprep.subr.mxu0 0.0
    %97 = vmatpush1.xpose.msra.mxu0 %v65
    %98 = vmatprep.subr.mxu0 0.0
    %99 = vmatpush1.xpose.msra.mxu0 %v64
    %100 = vmatprep.subr.mxu0 0.0
    %101 = vmatpush1.xpose.msra.mxu0 %v63
    %102 = vmatprep.subr.mxu0 0.0
    %103 = vmatpush1.xpose.msra.mxu0 %v62
    %104 = vmatprep.subr.mxu0 0.0
    %105 = vmatpush1.xpose.msra.mxu0 %v61
    %106 = vmatprep.subr.mxu0 0.0
    %107 = vmatpush1.xpose.msra.mxu0 %v60
    %108 = vmatprep.subr.mxu0 0.0
    %109 = vmatpush2.xpose.msra.mxu0 0.0
    %110 = vmatprep.subr.mxu0 0.0
    %111 = vmatpush2.xpose.msra.mxu0 0.0
    %112 = vmatprep.subr.mxu0 0.0
    %113 = vmatpush2.xpose.msra.mxu0 0.0
    %114 = vmatprep.subr.mxu0 0.0
    %115 = vmatpush2.xpose.msra.mxu0 0.0
    %116 = vmatprep.subr.mxu0 0.0
    %117 = vmatpush2.xpose.msra.mxu0 0.0
    %118 = vmatprep.subr.mxu0 0.0
    %119 = vmatpush2.xpose.msra.mxu0 0.0
    %120 = vmatprep.subr.mxu0 0.0
    %121 = vmatpush2.xpose.msra.mxu0 0.0
    %122 = vmatprep.subr.mxu0 0.0
    %123 = vmatpush2.xpose.msra.mxu0 0.0
    %124 = vmatprep.subr.mxu0 0.0
    %125 = vmatpush2.xpose.msra.mxu0 0.0
    %126 = vmatprep.subr.mxu0 0.0
    %127 = vmatpush2.xpose.msra.mxu0 0.0
    %128 = vmatprep.subr.mxu0 0.0
    %129 = vmatpush2.xpose.msra.mxu0 0.0
    %130 = vmatprep.subr.mxu0 0.0
    %131 = vmatpush2.xpose.msra.mxu0 0.0
    %132 = vmatprep.subr.mxu0 0.0
    %133 = vmatpush2.xpose.msra.mxu0 0.0
    %134 = vmatprep.subr.mxu0 0.0
    %135 = vmatpush2.xpose.msra.mxu0 0.0
    %136 = vmatprep.subr.mxu0 0.0
    %137 = vmatpush2.xpose.msra.mxu0 0.0
    %138 = vmatprep.subr.mxu0 0.0
    %139 = vmatpush2.xpose.msra.mxu0 0.0
    %140 = vmatprep.mubr.f32.mxu0 0.0
    %141 = vmatmul.mubr.f32.gmra.mxu0 %v57
    %v142 = vpop.f32.mrf.mxu0
    %v143 = vadd.f32 0.0, %v142
    %v144 = vpop.f32.mrf.mxu0
    %145 = vmatprep.mubr.f32.mxu0 0.0
    %146 = vmatmul.mubr.f32.gmra.mxu0 %v58
    %v147 = vpop.f32.mrf.mxu0
    %v148 = vadd.f32 0.0, %v147
    %v149 = vpop.f32.mrf.mxu0
    %150 = vmatprep.mubr.f32.mxu0 0.0
    %151 = vmatmul.mubr.f32.gmra.mxu0 %v59
    %v152 = vpop.f32.mrf.mxu0
    %v153 = vadd.f32 0.0, %v152
    %v154 = vpop.f32.mrf.mxu0
    %155 = vdwg.mxu0
    %v156 = vmul.f32 %v143, 2.0
    %v157 = vmul.f32 %v148, 2.0
    %v158 = vmul.f32 %v153, 2.0
    %v159 = vsub.f32 2.0, %v156
    %v160 = vsub.f32 2.0, %v157
    %v161 = vsub.f32 2.0, %v158
    %v162 = vmax.f32 %v159, 0.0
    %v163 = vmax.f32 %v160, 0.0
    %v164 = vmax.f32 %v161, 0.0
    %v165 = vrsqrt.pop %v162
    %v166 = vmul.f32 %v162, %v165
    %vm167 = vcmp.eq.f32.partialorder %v162, inf
    %v168 = vsel %vm167, %v162, %v166
    %vm169 = vcmp.eq.f32.partialorder %v162, 0.0
    %v170 = vand.u32 %v162, 2147483648
    %v171 = vsel %vm169, %v170, %v168
    %v172 = vrsqrt.pop %v163
    %v173 = vmul.f32 %v163, %v172
    %vm174 = vcmp.eq.f32.partialorder %v163, inf
    %v175 = vsel %vm174, %v163, %v173
    %vm176 = vcmp.eq.f32.partialorder %v163, 0.0
    %v177 = vand.u32 %v163, 2147483648
    %v178 = vsel %vm176, %v177, %v175
    %v179 = vrsqrt.pop %v164
    %v180 = vmul.f32 %v164, %v179
    %vm181 = vcmp.eq.f32.partialorder %v164, inf
    %v182 = vsel %vm181, %v164, %v180
    %vm183 = vcmp.eq.f32.partialorder %v164, 0.0
    %v184 = vand.u32 %v164, 2147483648
    %v185 = vsel %vm183, %v184, %v182
    %v186 = vlaneseq
    %v187 = vshrl.u32 %v186, 7
    %v188 = vadd.s32 %v187, 8
    %v189 = vadd.s32 %v187, 16
    %v190 = vlaneseq
    %v191 = vand.u32 %v190, 127
    %s192 = sld [smem:[#allocation2]]
    %v193 = vstv %s192
    %vm194 = vcmp.eq.s32.totalorder %v187, %v193
    %vm195 = vcmp.eq.s32.totalorder %v188, %v193
    %vm196 = vcmp.eq.s32.totalorder %v189, %v193
    %s197 = sld [smem:[#allocation5]]
    %v198 = vstv %s197
    %vm199 = vcmp.eq.s32.totalorder %v191, %v198
    %vm200 = vmand %vm194, %vm199
    %vm201 = vmand %vm195, %vm199
    %vm202 = vmand %vm196, %vm199
    %s203 = sld [smem:[#allocation7]]
    %v204 = vstv %s203
    %v205 = vsel %vm200, %v204, 0.0
    %v206 = vsel %vm201, %v204, 0.0
    %v207 = vsel %vm202, %v204, 0.0
    %s208 = sld [smem:[#allocation2 + $0x1]]
    %v209 = vstv %s208
    %vm210 = vcmp.eq.s32.totalorder %v187, %v209
    %vm211 = vcmp.eq.s32.totalorder %v188, %v209
    %vm212 = vcmp.eq.s32.totalorder %v189, %v209
    %s213 = sld [smem:[#allocation5 + $0x1]]
    %v214 = vstv %s213
    %vm215 = vcmp.eq.s32.totalorder %v191, %v214
    %vm216 = vmand %vm210, %vm215
    %vm217 = vmand %vm211, %vm215
    %vm218 = vmand %vm212, %vm215
    %s219 = sld [smem:[#allocation7 + $0x1]]
    %v220 = vstv %s219
    %v221 = vsel %vm216, %v220, %v205
    %v222 = vsel %vm217, %v220, %v206
    %v223 = vsel %vm218, %v220, %v207
    %s224 = sld [smem:[#allocation2 + $0x2]]
    %v225 = vstv %s224
    %vm226 = vcmp.eq.s32.totalorder %v187, %v225
    %vm227 = vcmp.eq.s32.totalorder %v188, %v225
    %vm228 = vcmp.eq.s32.totalorder %v189, %v225
    %s229 = sld [smem:[#allocation5 + $0x2]]
    %v230 = vstv %s229
    %vm231 = vcmp.eq.s32.totalorder %v191, %v230
    %vm232 = vmand %vm226, %vm231
    %vm233 = vmand %vm227, %vm231
    %vm234 = vmand %vm228, %vm231
    %s235 = sld [smem:[#allocation7 + $0x2]]
    %v236 = vstv %s235
    %v237 = vsel %vm232, %v236, %v221
    %v238 = vsel %vm233, %v236, %v222
    %v239 = vsel %vm234, %v236, %v223
    %s240 = sld [smem:[#allocation2 + $0x3]]
    %v241 = vstv %s240
    %vm242 = vcmp.eq.s32.totalorder %v187, %v241
    %vm243 = vcmp.eq.s32.totalorder %v188, %v241
    %vm244 = vcmp.eq.s32.totalorder %v189, %v241
    %s245 = sld [smem:[#allocation5 + $0x3]]
    %v246 = vstv %s245
    %vm247 = vcmp.eq.s32.totalorder %v191, %v246
    %vm248 = vmand %vm242, %vm247
    %vm249 = vmand %vm243, %vm247
    %vm250 = vmand %vm244, %vm247
    %s251 = sld [smem:[#allocation7 + $0x3]]
    %v252 = vstv %s251
    %v253 = vsel %vm248, %v252, %v237
    %v254 = vsel %vm249, %v252, %v238
    %v255 = vsel %vm250, %v252, %v239
    %s256 = sld [smem:[#allocation2 + $0x4]]
    %v257 = vstv %s256
    %vm258 = vcmp.eq.s32.totalorder %v187, %v257
    %vm259 = vcmp.eq.s32.totalorder %v188, %v257
    %vm260 = vcmp.eq.s32.totalorder %v189, %v257
    %s261 = sld [smem:[#allocation5 + $0x4]]
    %v262 = vstv %s261
    %vm263 = vcmp.eq.s32.totalorder %v191, %v262
    %vm264 = vmand %vm258, %vm263
    %vm265 = vmand %vm259, %vm263
    %vm266 = vmand %vm260, %vm263
    %s267 = sld [smem:[#allocation7 + $0x4]]
    %v268 = vstv %s267
    %v269 = vsel %vm264, %v268, %v253
    %v270 = vsel %vm265, %v268, %v254
    %v271 = vsel %vm266, %v268, %v255
    %s272 = sld [smem:[#allocation2 + $0x5]]
    %v273 = vstv %s272
    %vm274 = vcmp.eq.s32.totalorder %v187, %v273
    %vm275 = vcmp.eq.s32.totalorder %v188, %v273
    %vm276 = vcmp.eq.s32.totalorder %v189, %v273
    %s277 = sld [smem:[#allocation5 + $0x5]]
    %v278 = vstv %s277
    %vm279 = vcmp.eq.s32.totalorder %v191, %v278
    %vm280 = vmand %vm274, %vm279
    %vm281 = vmand %vm275, %vm279
    %vm282 = vmand %vm276, %vm279
    %s283 = sld [smem:[#allocation7 + $0x5]]
    %v284 = vstv %s283
    %v285 = vsel %vm280, %v284, %v269
    %v286 = vsel %vm281, %v284, %v270
    %v287 = vsel %vm282, %v284, %v271
    %s288 = sld [smem:[#allocation2 + $0x6]]
    %v289 = vstv %s288
    %vm290 = vcmp.eq.s32.totalorder %v187, %v289
    %vm291 = vcmp.eq.s32.totalorder %v188, %v289
    %vm292 = vcmp.eq.s32.totalorder %v189, %v289
    %s293 = sld [smem:[#allocation5 + $0x6]]
    %v294 = vstv %s293
    %vm295 = vcmp.eq.s32.totalorder %v191, %v294
    %vm296 = vmand %vm290, %vm295
    %vm297 = vmand %vm291, %vm295
    %vm298 = vmand %vm292, %vm295
    %s299 = sld [smem:[#allocation7 + $0x6]]
    %v300 = vstv %s299
    %v301 = vsel %vm296, %v300, %v285
    %v302 = vsel %vm297, %v300, %v286
    %v303 = vsel %vm298, %v300, %v287
    %s304 = sld [smem:[#allocation2 + $0x7]]
    %v305 = vstv %s304
    %vm306 = vcmp.eq.s32.totalorder %v187, %v305
    %vm307 = vcmp.eq.s32.totalorder %v188, %v305
    %vm308 = vcmp.eq.s32.totalorder %v189, %v305
    %s309 = sld [smem:[#allocation5 + $0x7]]
    %v310 = vstv %s309
    %vm311 = vcmp.eq.s32.totalorder %v191, %v310
    %vm312 = vmand %vm306, %vm311
    %vm313 = vmand %vm307, %vm311
    %vm314 = vmand %vm308, %vm311
    %s315 = sld [smem:[#allocation7 + $0x7]]
    %v316 = vstv %s315
    %v317 = vsel %vm312, %v316, %v301
    %v318 = vsel %vm313, %v316, %v302
    %v319 = vsel %vm314, %v316, %v303
    %s320 = sld [smem:[#allocation2 + $0x8]]
    %v321 = vstv %s320
    %vm322 = vcmp.eq.s32.totalorder %v187, %v321
    %vm323 = vcmp.eq.s32.totalorder %v188, %v321
    %vm324 = vcmp.eq.s32.totalorder %v189, %v321
    %s325 = sld [smem:[#allocation5 + $0x8]]
    %v326 = vstv %s325
    %vm327 = vcmp.eq.s32.totalorder %v191, %v326
    %vm328 = vmand %vm322, %vm327
    %vm329 = vmand %vm323, %vm327
    %vm330 = vmand %vm324, %vm327
    %s331 = sld [smem:[#allocation7 + $0x8]]
    %v332 = vstv %s331
    %v333 = vsel %vm328, %v332, %v317
    %v334 = vsel %vm329, %v332, %v318
    %v335 = vsel %vm330, %v332, %v319
    %s336 = sld [smem:[#allocation2 + $0x9]]
    %v337 = vstv %s336
    %vm338 = vcmp.eq.s32.totalorder %v187, %v337
    %vm339 = vcmp.eq.s32.totalorder %v188, %v337
    %vm340 = vcmp.eq.s32.totalorder %v189, %v337
    %s341 = sld [smem:[#allocation5 + $0x9]]
    %v342 = vstv %s341
    %vm343 = vcmp.eq.s32.totalorder %v191, %v342
    %vm344 = vmand %vm338, %vm343
    %vm345 = vmand %vm339, %vm343
    %vm346 = vmand %vm340, %vm343
    %s347 = sld [smem:[#allocation7 + $0x9]]
    %v348 = vstv %s347
    %v349 = vsel %vm344, %v348, %v333
    %v350 = vsel %vm345, %v348, %v334
    %v351 = vsel %vm346, %v348, %v335
    %vm352 = vcmp.lt.s32.totalorder %v187, 24
    %vm353 = vcmp.lt.s32.totalorder %v188, 24
    %vm354 = vcmp.lt.s32.totalorder %v189, 24
    %vm355 = vcmp.lt.s32.totalorder %v191, 16
    %vm356 = vmand %vm352, %vm355
    %vm357 = vmand %vm353, %vm355
    %vm358 = vmand %vm354, %vm355
    %vm359 = vcmp.gt.f32.partialorder %v349, 0.1
    %vm360 = vcmp.gt.f32.partialorder %v350, 0.1
    %vm361 = vcmp.gt.f32.partialorder %v351, 0.1
    %vm362 = vmand %vm359, %vm356
    %vm363 = vmand %vm360, %vm357
    %vm364 = vmand %vm361, %vm358
    %vm365 = vcmp.eq.f32.partialorder %v349, 0.0
    %vm366 = vcmp.eq.f32.partialorder %v350, 0.0
    %vm367 = vcmp.eq.f32.partialorder %v351, 0.0
    %vm368 = vmand %vm365, %vm356
    %vm369 = vmand %vm366, %vm357
    %vm370 = vmand %vm367, %vm358
    %v371 = vsel %vm362, 1, 0
    %v372 = vsel %vm363, 1, 0
    %v373 = vsel %vm364, 1, 0
    %v374 = vcvt.s32.f32 %v371
    %v375 = vcvt.s32.f32 %v372
    %v376 = vcvt.s32.f32 %v373
    %v377 = vsel %vm368, 1, 0
    %v378 = vsel %vm369, 1, 0
    %v379 = vsel %vm370, 1, 0
    %v380 = vcvt.s32.f32 %v377
    %v381 = vcvt.s32.f32 %v378
    %v382 = vcvt.s32.f32 %v379
    %v383 = vmul.f32 %v349, %v374
    %v384 = vmul.f32 %v350, %v375
    %v385 = vmul.f32 %v351, %v376
    %v386 = vrsqrt.pop %v383
    %v387 = vmul.f32 %v383, %v386
    %vm388 = vcmp.eq.f32.partialorder %v383, inf
    %v389 = vsel %vm388, %v383, %v387
    %vm390 = vcmp.eq.f32.partialorder %v383, 0.0
    %v391 = vand.u32 %v383, 2147483648
    %v392 = vsel %vm390, %v391, %v389
    %v393 = vrsqrt.pop %v384
    %v394 = vmul.f32 %v384, %v393
    %vm395 = vcmp.eq.f32.partialorder %v384, inf
    %v396 = vsel %vm395, %v384, %v394
    %vm397 = vcmp.eq.f32.partialorder %v384, 0.0
    %v398 = vand.u32 %v384, 2147483648
    %v399 = vsel %vm397, %v398, %v396
    %v400 = vrsqrt.pop %v385
    %v401 = vmul.f32 %v385, %v400
    %vm402 = vcmp.eq.f32.partialorder %v385, inf
    %v403 = vsel %vm402, %v385, %v401
    %vm404 = vcmp.eq.f32.partialorder %v385, 0.0
    %v405 = vand.u32 %v385, 2147483648
    %v406 = vsel %vm404, %v405, %v403
    %v407 = vsub.f32 1.0, %v374
    %v408 = vsub.f32 1.0, %v375
    %v409 = vsub.f32 1.0, %v376
    %v410 = vmul.f32 %v407, 100000.0
    %v411 = vmul.f32 %v408, 100000.0
    %v412 = vmul.f32 %v409, 100000.0
    %v413 = vsub.f32 %v171, %v410
    %v414 = vsub.f32 %v178, %v411
    %v415 = vsub.f32 %v185, %v412
    %v416 = vsub.f32 %v413, 0.1
    %v417 = vsub.f32 %v414, 0.1
    %v418 = vsub.f32 %v415, 0.1
    %v419 = vmax.f32 %v416, 0.0
    %v420 = vmax.f32 %v417, 0.0
    %v421 = vmax.f32 %v418, 0.0
    %v422 = vmul.f32 %v419, %v392
    %v423 = vmul.f32 %v420, %v399
    %v424 = vmul.f32 %v421, %v406
    %v425 = vsub.f32 1.0, %v380
    %v426 = vsub.f32 1.0, %v381
    %v427 = vsub.f32 1.0, %v382
    %v428 = vmul.f32 %v425, 100000.0
    %v429 = vmul.f32 %v426, 100000.0
    %v430 = vmul.f32 %v427, 100000.0
    %v431 = vadd.f32 %v171, %v428
    %v432 = vadd.f32 %v178, %v429
    %v433 = vadd.f32 %v185, %v430
    %v434 = vsub.f32 1.4, %v431
    %v435 = vsub.f32 1.4, %v432
    %v436 = vsub.f32 1.4, %v433
    %v437 = vmax.f32 %v434, 0.0
    %v438 = vmax.f32 %v435, 0.0
    %v439 = vmax.f32 %v436, 0.0
    %v440 = vsub.f32 %v171, 0.1
    %v441 = vsub.f32 %v178, 0.1
    %v442 = vsub.f32 %v185, 0.1
    %v443 = vmul.f32 %v440, 24.0
    %v444 = vmul.f32 %v441, 24.0
    %v445 = vmul.f32 %v442, 24.0
    %v446 = vmul.f32 %v443, %v422
    %v447 = vmul.f32 %v444, %v423
    %v448 = vmul.f32 %v445, %v424
    %v449 = vsub.f32 1.4, %v171
    %v450 = vsub.f32 1.4, %v178
    %v451 = vsub.f32 1.4, %v185
    %v452 = vmul.f32 %v449, 24.0
    %v453 = vmul.f32 %v450, 24.0
    %v454 = vmul.f32 %v451, 24.0
    %v455 = vmul.f32 %v452, %v437
    %v456 = vmul.f32 %v453, %v438
    %v457 = vmul.f32 %v454, %v439
    %v458 = vsel %vm356, %v446, -1e+30
    %v459 = vsel %vm357, %v447, -1e+30
    %v460 = vsel %vm358, %v448, -1e+30
    %v461 = vsel %vm356, %v455, -1e+30
    %v462 = vsel %vm357, %v456, -1e+30
    %v463 = vsel %vm358, %v457, -1e+30
    %464 = vmax.xlane.f32.xlu0 %v458
    %v465 = vpop.xlane.xlu0 %464
    %466 = vmax.xlane.f32.xlu0 %v459
    %v467 = vpop.xlane.xlu0 %466
    %468 = vmax.xlane.f32.xlu0 %v460
    %v469 = vpop.xlane.xlu0 %468
    %v470 = vsub.f32 %v458, %v465
    %v471 = vsub.f32 %v459, %v467
    %v472 = vsub.f32 %v460, %v469
    %v473 = vmul.f32 %v470, 1.442695
    %v474 = vpow.pop %v473
    %v475 = vmul.f32 %v471, 1.442695
    %v476 = vpow.pop %v475
    %v477 = vmul.f32 %v472, 1.442695
    %v478 = vpow.pop %v477
    %479 = vadd.xlane.f32.xlu0 %v474
    %v480 = vpop.xlane.xlu0 %479
    %481 = vadd.xlane.f32.xlu0 %v476
    %v482 = vpop.xlane.xlu0 %481
    %483 = vadd.xlane.f32.xlu0 %v478
    %v484 = vpop.xlane.xlu0 %483
    %v485 = vlog2.pop %v480
    %v486 = vmul.f32 %v485, 0.6931472
    %v487 = vlog2.pop %v482
    %v488 = vmul.f32 %v487, 0.6931472
    %v489 = vlog2.pop %v484
    %v490 = vmul.f32 %v489, 0.6931472
    %v491 = vadd.f32 %v465, %v486
    %v492 = vadd.f32 %v467, %v488
    %v493 = vadd.f32 %v469, %v490
    %494 = vmax.xlane.f32.xlu0 %v461
    %v495 = vpop.xlane.xlu0 %494
    %496 = vmax.xlane.f32.xlu0 %v462
    %v497 = vpop.xlane.xlu0 %496
    %498 = vmax.xlane.f32.xlu0 %v463
    %v499 = vpop.xlane.xlu0 %498
    %v500 = vsub.f32 %v461, %v495
    %v501 = vsub.f32 %v462, %v497
    %v502 = vsub.f32 %v463, %v499
    %v503 = vmul.f32 %v500, 1.442695
    %v504 = vpow.pop %v503
    %v505 = vmul.f32 %v501, 1.442695
    %v506 = vpow.pop %v505
    %v507 = vmul.f32 %v502, 1.442695
    %v508 = vpow.pop %v507
    %509 = vadd.xlane.f32.xlu0 %v504
    %v510 = vpop.xlane.xlu0 %509
    %511 = vadd.xlane.f32.xlu0 %v506
    %v512 = vpop.xlane.xlu0 %511
    %513 = vadd.xlane.f32.xlu0 %v508
    %v514 = vpop.xlane.xlu0 %513
    %v515 = vlog2.pop %v510
    %v516 = vmul.f32 %v515, 0.6931472
    %v517 = vlog2.pop %v512
    %v518 = vmul.f32 %v517, 0.6931472
    %v519 = vlog2.pop %v514
    %v520 = vmul.f32 %v519, 0.6931472
    %v521 = vadd.f32 %v495, %v516
    %v522 = vadd.f32 %v497, %v518
    %v523 = vadd.f32 %v499, %v520
    %v524 = vmax.f32 %v458, %v459
    %v525 = vmax.f32 %v524, %v460
    %v526 = vrot.slane %v525, 4
    %v527 = vmax.f32 %v525, %v526
    %v528 = vrot.slane %v527, 2
    %v529 = vmax.f32 %v527, %v528
    %v530 = vrot.slane %v529, 1
    %v531 = vmax.f32 %v529, %v530
    %v532 = vsub.f32 %v458, %v531
    %v533 = vsub.f32 %v459, %v531
    %v534 = vsub.f32 %v460, %v531
    %v535 = vmul.f32 %v532, 1.442695
    %v536 = vpow.pop %v535
    %v537 = vmul.f32 %v533, 1.442695
    %v538 = vpow.pop %v537
    %v539 = vmul.f32 %v534, 1.442695
    %v540 = vpow.pop %v539
    %v541 = vadd.f32 %v536, %v538
    %v542 = vadd.f32 %v541, %v540
    %v543 = vrot.slane %v542, 4
    %v544 = vadd.f32 %v542, %v543
    %v545 = vrot.slane %v544, 2
    %v546 = vadd.f32 %v544, %v545
    %v547 = vrot.slane %v546, 1
    %v548 = vadd.f32 %v546, %v547
    %v549 = vlog2.pop %v548
    %v550 = vmul.f32 %v549, 0.6931472
    %v551 = vadd.f32 %v531, %v550
    %v552 = vmax.f32 %v461, %v462
    %v553 = vmax.f32 %v552, %v463
    %v554 = vrot.slane %v553, 4
    %v555 = vmax.f32 %v553, %v554
    %v556 = vrot.slane %v555, 2
    %v557 = vmax.f32 %v555, %v556
    %v558 = vrot.slane %v557, 1
    %v559 = vmax.f32 %v557, %v558
    %v560 = vsub.f32 %v461, %v559
    %v561 = vsub.f32 %v462, %v559
    %v562 = vsub.f32 %v463, %v559
    %v563 = vmul.f32 %v560, 1.442695
    %v564 = vpow.pop %v563
    %v565 = vmul.f32 %v561, 1.442695
    %v566 = vpow.pop %v565
    %v567 = vmul.f32 %v562, 1.442695
    %v568 = vpow.pop %v567
    %v569 = vadd.f32 %v564, %v566
    %v570 = vadd.f32 %v569, %v568
    %v571 = vrot.slane %v570, 4
    %v572 = vadd.f32 %v570, %v571
    %v573 = vrot.slane %v572, 2
    %v574 = vadd.f32 %v572, %v573
    %v575 = vrot.slane %v574, 1
    %v576 = vadd.f32 %v574, %v575
    %v577 = vlog2.pop %v576
    %v578 = vmul.f32 %v577, 0.6931472
    %v579 = vadd.f32 %v559, %v578
    %v580 = vadd.f32 %v491, %v521
    %v581 = vadd.f32 %v492, %v522
    %v582 = vadd.f32 %v493, %v523
    %v583 = vmax.f32 %v580, 0.0
    %v584 = vmax.f32 %v581, 0.0
    %v585 = vmax.f32 %v582, 0.0
    %v586 = vand.u32 2147483647, %v580
    %v587 = vand.u32 2147483647, %v581
    %v588 = vand.u32 2147483647, %v582
    %v589 = vsub.f32 0.0, %v586
    %v590 = vsub.f32 0.0, %v587
    %v591 = vsub.f32 0.0, %v588
    %v592 = vmul.f32 %v589, 1.442695
    %v593 = vpow.pop %v592
    %v594 = vmul.f32 %v590, 1.442695
    %v595 = vpow.pop %v594
    %v596 = vmul.f32 %v591, 1.442695
    %v597 = vpow.pop %v596
    %v598 = vadd.f32 %v593, 1.0
    %v599 = vlog2.pop %v598
    %v600 = vmul.f32 %v599, 0.6931472
    %v601 = vmul.f32 -0.5, %v593
    %v602 = vadd.f32 %v601, 1.0
    %v603 = vmul.f32 %v602, %v593
    %v604 = vand.u32 2147483647, %v593
    %vm605 = vcmp.lt.f32.partialorder %v604, 0.0004427343
    %v606 = vsel %vm605, %v603, %v600
    %v607 = vadd.f32 %v595, 1.0
    %v608 = vlog2.pop %v607
    %v609 = vmul.f32 %v608, 0.6931472
    %v610 = vmul.f32 -0.5, %v595
    %v611 = vadd.f32 %v610, 1.0
    %v612 = vmul.f32 %v611, %v595
    %v613 = vand.u32 2147483647, %v595
    %vm614 = vcmp.lt.f32.partialorder %v613, 0.0004427343
    %v615 = vsel %vm614, %v612, %v609
    %v616 = vadd.f32 %v597, 1.0
    %v617 = vlog2.pop %v616
    %v618 = vmul.f32 %v617, 0.6931472
    %v619 = vmul.f32 -0.5, %v597
    %v620 = vadd.f32 %v619, 1.0
    %v621 = vmul.f32 %v620, %v597
    %v622 = vand.u32 2147483647, %v597
    %vm623 = vcmp.lt.f32.partialorder %v622, 0.0004427343
    %v624 = vsel %vm623, %v621, %v618
    %v625 = vadd.f32 %v583, %v606
    %v626 = vadd.f32 %v584, %v615
    %v627 = vadd.f32 %v585, %v624
    %v628 = vrcp.pop 24.0
    %v629 = vmul.f32 %v625, %v628
    %v630 = vmul.f32 %v626, %v628
    %v631 = vmul.f32 %v627, %v628
    %v632 = vadd.f32 %v551, %v579
    %v633 = vmax.f32 %v632, 0.0
    %v634 = vand.u32 2147483647, %v632
    %v635 = vsub.f32 0.0, %v634
    %v636 = vmul.f32 %v635, 1.442695
    %v637 = vpow.pop %v636
    %v638 = vadd.f32 %v637, 1.0
    %v639 = vlog2.pop %v638
    %v640 = vmul.f32 %v639, 0.6931472
    %v641 = vmul.f32 -0.5, %v637
    %v642 = vadd.f32 %v641, 1.0
    %v643 = vmul.f32 %v642, %v637
    %v644 = vand.u32 2147483647, %v637
    %vm645 = vcmp.lt.f32.partialorder %v644, 0.0004427343
    %v646 = vsel %vm645, %v643, %v640
    %v647 = vadd.f32 %v633, %v646
    %v648 = vmul.f32 %v647, %v628
    %649 = vadd.xlane.f32.xlu0 %v374
    %v650 = vpop.xlane.xlu0 %649
    %651 = vadd.xlane.f32.xlu0 %v375
    %v652 = vpop.xlane.xlu0 %651
    %653 = vadd.xlane.f32.xlu0 %v376
    %v654 = vpop.xlane.xlu0 %653
    %vm655 = vcmp.gt.f32.partialorder %v650, 0.0
    %vm656 = vcmp.gt.f32.partialorder %v652, 0.0
    %vm657 = vcmp.gt.f32.partialorder %v654, 0.0
    %658 = vadd.xlane.f32.xlu0 %v380
    %v659 = vpop.xlane.xlu0 %658
    %660 = vadd.xlane.f32.xlu0 %v381
    %v661 = vpop.xlane.xlu0 %660
    %662 = vadd.xlane.f32.xlu0 %v382
    %v663 = vpop.xlane.xlu0 %662
    %vm664 = vcmp.gt.f32.partialorder %v659, 0.0
    %vm665 = vcmp.gt.f32.partialorder %v661, 0.0
    %vm666 = vcmp.gt.f32.partialorder %v663, 0.0
    %vm667 = vmand %vm655, %vm664
    %vm668 = vmand %vm656, %vm665
    %vm669 = vmand %vm657, %vm666
    %v670 = vsel %vm667, 1, 0
    %v671 = vsel %vm668, 1, 0
    %v672 = vsel %vm669, 1, 0
    %v673 = vcvt.s32.f32 %v670
    %v674 = vcvt.s32.f32 %v671
    %v675 = vcvt.s32.f32 %v672
    %v676 = vadd.f32 %v374, %v375
    %v677 = vadd.f32 %v676, %v376
    %v678 = vrot.slane %v677, 4
    %v679 = vadd.f32 %v677, %v678
    %v680 = vrot.slane %v679, 2
    %v681 = vadd.f32 %v679, %v680
    %v682 = vrot.slane %v681, 1
    %v683 = vadd.f32 %v681, %v682
    %vm684 = vcmp.gt.f32.partialorder %v683, 0.0
    %v685 = vadd.f32 %v380, %v381
    %v686 = vadd.f32 %v685, %v382
    %v687 = vrot.slane %v686, 4
    %v688 = vadd.f32 %v686, %v687
    %v689 = vrot.slane %v688, 2
    %v690 = vadd.f32 %v688, %v689
    %v691 = vrot.slane %v690, 1
    %v692 = vadd.f32 %v690, %v691
    %vm693 = vcmp.gt.f32.partialorder %v692, 0.0
    %vm694 = vmand %vm684, %vm693
    %v695 = vsel %vm694, 1, 0
    %v696 = vcvt.s32.f32 %v695
    %v697 = vmul.f32 %v629, %v673
    %v698 = vmul.f32 %v630, %v674
    %v699 = vmul.f32 %v631, %v675
    %v700 = vadd.f32 %v697, %v698
    %v701 = vadd.f32 %v700, %v699
    %v702 = vrot.slane %v701, 4
    %v703 = vadd.f32 %v701, %v702
    %v704 = vrot.slane %v703, 2
    %v705 = vadd.f32 %v703, %v704
    %v706 = vrot.slane %v705, 1
    %v707 = vadd.f32 %v705, %v706
    %v708 = vadd.f32 %v673, %v674
    %v709 = vadd.f32 %v708, %v675
    %v710 = vrot.slane %v709, 4
    %v711 = vadd.f32 %v709, %v710
    %v712 = vrot.slane %v711, 2
    %v713 = vadd.f32 %v711, %v712
    %v714 = vrot.slane %v713, 1
    %v715 = vadd.f32 %v713, %v714
    %v716 = vmul.f32 %v648, %v696
    %717 = vadd.xlane.f32.xlu0 %v716
    %v718 = vpop.xlane.xlu0 %717
    %719 = vadd.xlane.f32.xlu0 %v696
    %v720 = vpop.xlane.xlu0 %719
    %v721 = vrcp.pop %v715
    %v722 = vmul.f32 %v707, %v721
    %v723 = vrcp.pop %v720
    %v724 = vmul.f32 %v718, %v723
    %v725 = vadd.f32 %v722, %v724
    %v726 = vmul.f32 %v725, 0.5
    %vm727 = vcmask 0
    %728 = vst.msk [vmem:[#allocation8] sm:$0x1] %vm727, %v726
    // Predicated region
    $region34: #{coarse_matching_loss.1} parent=1 // pred_check
      _
    $region35: #{coarse_matching_loss.1} parent=1 // pred_check_branch
      %730 = sbr.rel (0) target = $region37
    $region36: #{coarse_matching_loss.1} parent=1 // pred_region
      %s732 = ssub.s32 16, 16
      %733 = vsyncadd [#allocation3], %s732
      %s735 = sshll.u32 [#allocation8], 4
      %s736 = int_to_ptr.vmem [resolvable:$true] %s735
      %738 = dma.vmem_to_hbm [thread:$0]  %s736, 16, %s5, [#allocation3]
    $region37: #{coarse_matching_loss.1} parent=1 // pred_fallthru
      _
    // Predicated region
    $region38: #{coarse_matching_loss.1} parent=1 // pred_check
      _
    $region39: #{coarse_matching_loss.1} parent=1 // pred_check_branch
      %740 = sbr.rel (0) target = $region41
    $region40: #{coarse_matching_loss.1} parent=1 // pred_region
      %741 = dma.done [#allocation3], 16
    $region41: #{coarse_matching_loss.1} parent=1 // pred_fallthru
      _
    %742 = vsyncpa [#allocation3], 1
    %743 = vsyncpa [#allocation4], 1
    %744 = vsyncpa [#allocation6], 1

</llo_original>
